<compile_context>
chip_gen: v7x
topology: tpu7x:2x2x1
jax: 0.10.0
libtpu: 0.0.40
codegen_flags: <defaults>
</compile_context>

<pallas_src>
import functools

import jax
import jax.numpy as jnp
from jax.experimental import pallas as pl
from jax.experimental.pallas import tpu as pltpu

_GRAY_W = (0.299, 0.587, 0.114)          # kornia rgb_to_grayscale weights
_NORM_MEAN = (0.485, 0.456, 0.406)
_NORM_STD = (0.229, 0.224, 0.225)
_INV_STD = tuple(1.0 / s for s in _NORM_STD)
_EPS = 1e-8


def _pick_compute_dtype():
    """bf16 jitter math on v6e/v7x (bf16 VALU/EUP); f32 elsewhere (v5e, ...)."""
    try:
        kind = jax.devices()[0].device_kind.lower()
    except Exception:
        return jnp.float32
    if ("v6" in kind) or ("v7" in kind) or ("7x" in kind):
        return jnp.bfloat16
    return jnp.float32


def _aug_kernel(params_ref, img_ref, out_ref, *, inv_npix, compute_dtype):
    """params_ref: SMEM (B*8,) f32; img_ref/out_ref: VMEM (1, 3, S, 128)."""
    b = pl.program_id(0)
    base = b * 8
    bf = params_ref[base + 0]     # brightness factor  ~ U[0.6, 1.4]
    cf = params_ref[base + 1]     # contrast factor    ~ U[0.6, 1.4]
    sf = params_ref[base + 2]     # saturation factor  ~ U[0.8, 1.2]
    hf = params_ref[base + 3]     # hue shift (fraction of color circle) ~ U[-0.1, 0.1]
    jit = params_ref[base + 4]    # 1.0 -> apply color jitter (p=0.8)
    gry = params_ref[base + 5]    # 1.0 -> apply grayscale    (p=0.2)

    cdt = compute_dtype

    # f32 channel reads straight from the resident VMEM block.
    r0 = img_ref[0, 0]
    g0 = img_ref[0, 1]
    b0 = img_ref[0, 2]

    def clamp01(v):
        return jnp.clip(v, 0.0, 1.0)

    def gray_of(r, g, bl):
        return _GRAY_W[0] * r + _GRAY_W[1] * g + _GRAY_W[2] * bl

    def write_out(r, g, bl):
        rf = r.astype(jnp.float32)
        gf = g.astype(jnp.float32)
        blf = bl.astype(jnp.float32)
        out_ref[0, 0] = ((rf - _NORM_MEAN[0]) * _INV_STD[0]).astype(out_ref.dtype)
        out_ref[0, 1] = ((gf - _NORM_MEAN[1]) * _INV_STD[1]).astype(out_ref.dtype)
        out_ref[0, 2] = ((blf - _NORM_MEAN[2]) * _INV_STD[2]).astype(out_ref.dtype)

    def finish(r, g, bl):
        # RandomGrayscale (p = 0.2), gated so the gray blend only runs when the
        # coin flip succeeded (both branches still write normalized output).
        @pl.when(gry > 0.5)
        def _():
            gv = gray_of(r, g, bl)
            write_out(gv, gv, gv)

        @pl.when(gry <= 0.5)
        def _():
            write_out(r, g, bl)

    # ---- jitter branch: only runs for the p=0.8 images that need it ----
    @pl.when(jit > 0.5)
    def _():
        # Contrast gray-mean first, as a fused f32 sum over a recomputed
        # brightness pass: no brightness temporaries pinned across the
        # reduction, and the true pixel count makes zero-padding harmless.
        gray_sum = jnp.sum(
            gray_of(clamp01(r0 * bf), clamp01(g0 * bf), clamp01(b0 * bf)))
        mg = gray_sum * inv_npix                     # f32 scalar
        off_c = ((1.0 - cf) * mg).astype(cdt)

        bf_c = bf.astype(cdt)
        cf_c = cf.astype(cdt)
        sf_c = sf.astype(cdt)
        hf_c = hf.astype(cdt)

        rc0 = r0.astype(cdt)
        gc0 = g0.astype(cdt)
        bc0 = b0.astype(cdt)

        # brightness + contrast (fused): clamp(cf * clamp(x*bf) + (1-cf)*mean)
        r2 = clamp01(cf_c * clamp01(rc0 * bf_c) + off_c)
        g2 = clamp01(cf_c * clamp01(gc0 * bf_c) + off_c)
        b2 = clamp01(cf_c * clamp01(bc0 * bf_c) + off_c)

        # saturation: blend with the per-pixel grayscale
        gray2 = gray_of(r2, g2, b2)
        one_m_sf = 1.0 - sf_c
        r3 = clamp01(sf_c * r2 + one_m_sf * gray2)
        g3 = clamp01(sf_c * g2 + one_m_sf * gray2)
        b3 = clamp01(sf_c * b2 + one_m_sf * gray2)

        # hue: RGB -> (h6, v, delta), rotate h, arithmetic HSV -> RGB
        maxc = jnp.maximum(jnp.maximum(r3, g3), b3)
        minc = jnp.minimum(jnp.minimum(r3, g3), b3)
        delta = maxc - minc
        inv_delta = pl.reciprocal(delta.astype(jnp.float32) + _EPS,
                                  approx=True).astype(cdt)
        rcd = (maxc - r3) * inv_delta
        gcd = (maxc - g3) * inv_delta
        bcd = (maxc - b3) * inv_delta
        h6 = jnp.where(maxc == r3, bcd - gcd,
             jnp.where(maxc == g3, 2.0 + rcd - bcd, 4.0 + gcd - rcd))
        # h6 in (-1-eps, 5+eps): a single conditional wrap replaces the % 6.
        h6 = jnp.where(h6 < 0.0, h6 + 6.0, h6)
        h6 = jnp.where(delta <= _EPS, 0.0, h6)
        h6 = h6 + hf_c * 6.0                          # hf*6 in [-0.6, 0.6]
        h6 = jnp.where(h6 < 0.0, h6 + 6.0,
             jnp.where(h6 >= 6.0, h6 - 6.0, h6))
        vs = delta                                    # == maxc * (delta/maxc)

        def chan(n):
            k = n + h6                                # in [1, 12)
            k = jnp.where(k >= 6.0, k - 6.0, k)       # (n + h6) mod 6
            w = jnp.clip(jnp.minimum(k, 4.0 - k), 0.0, 1.0)
            # maxc - vs*w is already in [minc, maxc] ⊂ [0,1]; max() only guards
            # the approx 1/(delta+eps) rounding.
            return jnp.maximum(maxc - vs * w, 0.0)

        finish(chan(5.0), chan(3.0), chan(1.0))

    # ---- no-jitter branch: still must produce the normalized output ----
    @pl.when(jit <= 0.5)
    def _():
        finish(r0, g0, b0)


def sample_aug_params(key, batch):
    """Sample the per-image random augmentation parameters (glue, plain JAX)."""
    k_b, k_c, k_s, k_h, k_pj, k_pg = jax.random.split(key, 6)
    brightness = jax.random.uniform(k_b, (batch,), minval=0.6, maxval=1.4)
    contrast = jax.random.uniform(k_c, (batch,), minval=0.6, maxval=1.4)
    saturation = jax.random.uniform(k_s, (batch,), minval=0.8, maxval=1.2)
    hue = jax.random.uniform(k_h, (batch,), minval=-0.1, maxval=0.1)
    apply_jit = (jax.random.uniform(k_pj, (batch,)) < 0.8).astype(jnp.float32)
    apply_gray = (jax.random.uniform(k_pg, (batch,)) < 0.2).astype(jnp.float32)
    pad = jnp.zeros((batch, 2), jnp.float32)
    return jnp.concatenate(
        [jnp.stack([brightness, contrast, saturation, hue, apply_jit, apply_gray],
                   axis=1), pad], axis=1).astype(jnp.float32)      # (B, 8)


def aug1_forward(img, params, *, compute_dtype=None, out_dtype=jnp.float32):
    """img: (B, 3, H, W) float32 in [0,1]; params: (B, 8) float32."""
    B, C, H, W = img.shape
    assert C == 3
    if compute_dtype is None:
        compute_dtype = _pick_compute_dtype()

    HW = H * W
    L = 128
    S = (HW + L - 1) // L
    pad = S * L - HW

    # Lane-dense view: flatten the spatial dims and zero-pad up to a lane
    # multiple so every store is an unmasked full-lane vst.
    x = img.reshape(B, C, HW).astype(jnp.float32)
    if pad:
        x = jnp.pad(x, ((0, 0), (0, 0), (0, pad)))
    x = x.reshape(B, C, S, L)
    params_flat = params.reshape(-1).astype(jnp.float32)    # 1-D SMEM prefetch

    kernel = functools.partial(
        _aug_kernel, inv_npix=1.0 / float(HW), compute_dtype=compute_dtype)

    out = pl.pallas_call(
        kernel,
        out_shape=jax.ShapeDtypeStruct((B, C, S, L), out_dtype),
        grid_spec=pltpu.PrefetchScalarGridSpec(
            num_scalar_prefetch=1,
            grid=(B,),
            in_specs=[pl.BlockSpec((1, C, S, L), lambda b, p: (b, 0, 0, 0))],
            out_specs=pl.BlockSpec((1, C, S, L), lambda b, p: (b, 0, 0, 0)),
        ),
        compiler_params=pltpu.CompilerParams(
            dimension_semantics=("parallel",),
            vmem_limit_bytes=64 * 1024 * 1024),
    )(params_flat, x)

    out = out.reshape(B, C, S * L)
    if pad:
        out = out[:, :, :HW]
    return out.reshape(B, C, H, W)


if __name__ == "__main__":
    key = jax.random.PRNGKey(0)
    k_img, k_par = jax.random.split(key)
    B, C, H, W = 2, 3, 16, 16
    img = jax.random.uniform(k_img, (B, C, H, W), dtype=jnp.float32)
    params = sample_aug_params(k_par, B)
    out = aug1_forward(img, params)
    jax.block_until_ready(out)
    assert out.shape == (B, C, H, W) and out.dtype == jnp.float32
    assert bool(jnp.all(jnp.isfinite(out)))
    print("KERNEL_OK")
</pallas_src>

<mosaic_0001>
module attributes {stable_mosaic.version = 11 : i64} {
  func.func @_aug_kernel(%arg0: i32, %arg1: memref<16xf32, #tpu.memory_space<smem>>, %arg2: memref<1x3x2x128xf32, #tpu.memory_space<vmem>>, %arg3: memref<1x3x2x128xf32, #tpu.memory_space<vmem>>) attributes {dimension_semantics = [#tpu.dimension_semantics<parallel>], iteration_bounds = array<i64: 2>, scalar_prefetch = 1 : i64, scratch_operands = 0 : i64, tpu.core_type = #tpu.core_type<tc>, window_params = [{transform_indices = @transform_0, window_bounds = array<i64: 1, 3, 2, 128>}, {transform_indices = @transform_1, window_bounds = array<i64: 1, 3, 2, 128>}]} {
    %c8_i32 = arith.constant 8 : i32
    %0 = arith.muli %arg0, %c8_i32 : i32
    %c0_i32 = arith.constant 0 : i32
    %1 = arith.addi %0, %c0_i32 : i32
    %2 = arith.index_cast %1 : i32 to index
    %3 = memref.load %arg1[%2] : memref<16xf32, #tpu.memory_space<smem>>
    %c1_i32 = arith.constant 1 : i32
    %4 = arith.addi %0, %c1_i32 : i32
    %5 = arith.index_cast %4 : i32 to index
    %6 = memref.load %arg1[%5] : memref<16xf32, #tpu.memory_space<smem>>
    %c2_i32 = arith.constant 2 : i32
    %7 = arith.addi %0, %c2_i32 : i32
    %8 = arith.index_cast %7 : i32 to index
    %9 = memref.load %arg1[%8] : memref<16xf32, #tpu.memory_space<smem>>
    %c3_i32 = arith.constant 3 : i32
    %10 = arith.addi %0, %c3_i32 : i32
    %11 = arith.index_cast %10 : i32 to index
    %12 = memref.load %arg1[%11] : memref<16xf32, #tpu.memory_space<smem>>
    %c4_i32 = arith.constant 4 : i32
    %13 = arith.addi %0, %c4_i32 : i32
    %14 = arith.index_cast %13 : i32 to index
    %15 = memref.load %arg1[%14] : memref<16xf32, #tpu.memory_space<smem>>
    %c5_i32 = arith.constant 5 : i32
    %16 = arith.addi %0, %c5_i32 : i32
    %17 = arith.index_cast %16 : i32 to index
    %18 = memref.load %arg1[%17] : memref<16xf32, #tpu.memory_space<smem>>
    %c0 = arith.constant 0 : index
    %c0_0 = arith.constant 0 : index
    %c0_1 = arith.constant 0 : index
    %c0_2 = arith.constant 0 : index
    %19 = vector.load %arg2[%c0, %c0_0, %c0_1, %c0_2] : memref<1x3x2x128xf32, #tpu.memory_space<vmem>>, vector<1x1x2x128xf32>
    %20 = vector.shape_cast %19 : vector<1x1x2x128xf32> to vector<2x128xf32>
    %c0_3 = arith.constant 0 : index
    %c1 = arith.constant 1 : index
    %c0_4 = arith.constant 0 : index
    %c0_5 = arith.constant 0 : index
    %21 = vector.load %arg2[%c0_3, %c1, %c0_4, %c0_5] : memref<1x3x2x128xf32, #tpu.memory_space<vmem>>, vector<1x1x2x128xf32>
    %22 = vector.shape_cast %21 : vector<1x1x2x128xf32> to vector<2x128xf32>
    %c0_6 = arith.constant 0 : index
    %c2 = arith.constant 2 : index
    %c0_7 = arith.constant 0 : index
    %c0_8 = arith.constant 0 : index
    %23 = vector.load %arg2[%c0_6, %c2, %c0_7, %c0_8] : memref<1x3x2x128xf32, #tpu.memory_space<vmem>>, vector<1x1x2x128xf32>
    %24 = vector.shape_cast %23 : vector<1x1x2x128xf32> to vector<2x128xf32>
    %cst = arith.constant 5.000000e-01 : f32
    %25 = arith.cmpf ogt, %15, %cst : f32
    %26 = arith.extui %25 : i1 to i32
    %c0_i32_9 = arith.constant 0 : i32
    %27 = arith.cmpi ne, %26, %c0_i32_9 : i32
    scf.if %27 {
      %31 = vector.broadcast %3 : f32 to vector<2x128xf32>
      %32 = arith.mulf %20, %31 : vector<2x128xf32>
      %cst_12 = arith.constant 0.000000e+00 : f32
      %cst_13 = arith.constant 1.000000e+00 : f32
      %33 = vector.broadcast %cst_12 : f32 to vector<2x128xf32>
      %34 = arith.maximumf %33, %32 : vector<2x128xf32>
      %35 = vector.broadcast %cst_13 : f32 to vector<2x128xf32>
      %36 = arith.minimumf %35, %34 : vector<2x128xf32>
      %37 = vector.broadcast %3 : f32 to vector<2x128xf32>
      %38 = arith.mulf %22, %37 : vector<2x128xf32>
      %cst_14 = arith.constant 0.000000e+00 : f32
      %cst_15 = arith.constant 1.000000e+00 : f32
      %39 = vector.broadcast %cst_14 : f32 to vector<2x128xf32>
      %40 = arith.maximumf %39, %38 : vector<2x128xf32>
      %41 = vector.broadcast %cst_15 : f32 to vector<2x128xf32>
      %42 = arith.minimumf %41, %40 : vector<2x128xf32>
      %43 = vector.broadcast %3 : f32 to vector<2x128xf32>
      %44 = arith.mulf %24, %43 : vector<2x128xf32>
      %cst_16 = arith.constant 0.000000e+00 : f32
      %cst_17 = arith.constant 1.000000e+00 : f32
      %45 = vector.broadcast %cst_16 : f32 to vector<2x128xf32>
      %46 = arith.maximumf %45, %44 : vector<2x128xf32>
      %47 = vector.broadcast %cst_17 : f32 to vector<2x128xf32>
      %48 = arith.minimumf %47, %46 : vector<2x128xf32>
      %cst_18 = arith.constant 2.990000e-01 : f32
      %49 = vector.broadcast %cst_18 : f32 to vector<2x128xf32>
      %50 = arith.mulf %49, %36 : vector<2x128xf32>
      %cst_19 = arith.constant 5.870000e-01 : f32
      %51 = vector.broadcast %cst_19 : f32 to vector<2x128xf32>
      %52 = arith.mulf %51, %42 : vector<2x128xf32>
      %53 = arith.addf %50, %52 : vector<2x128xf32>
      %cst_20 = arith.constant 1.140000e-01 : f32
      %54 = vector.broadcast %cst_20 : f32 to vector<2x128xf32>
      %55 = arith.mulf %54, %48 : vector<2x128xf32>
      %56 = arith.addf %53, %55 : vector<2x128xf32>
      %57 = vector.shape_cast %56 : vector<2x128xf32> to vector<1x2x128xf32>
      %cst_21 = arith.constant dense<0.000000e+00> : vector<1xf32>
      %58 = vector.multi_reduction <add>, %57, %cst_21 [1, 2] : vector<1x2x128xf32> to vector<1xf32>
      %59 = vector.shape_cast %58 : vector<1xf32> to vector<1x1x1xf32>
      %60 = vector.extract %59[0, 0, 0] : f32 from vector<1x1x1xf32>
      %cst_22 = arith.constant 3.906250e-03 : f32
      %61 = arith.mulf %60, %cst_22 : f32
      %cst_23 = arith.constant 1.000000e+00 : f32
      %62 = arith.subf %cst_23, %6 : f32
      %63 = arith.mulf %62, %61 : f32
      %64 = vector.broadcast %3 : f32 to vector<2x128xf32>
      %65 = arith.mulf %20, %64 : vector<2x128xf32>
      %cst_24 = arith.constant 0.000000e+00 : f32
      %cst_25 = arith.constant 1.000000e+00 : f32
      %66 = vector.broadcast %cst_24 : f32 to vector<2x128xf32>
      %67 = arith.maximumf %66, %65 : vector<2x128xf32>
      %68 = vector.broadcast %cst_25 : f32 to vector<2x128xf32>
      %69 = arith.minimumf %68, %67 : vector<2x128xf32>
      %70 = vector.broadcast %6 : f32 to vector<2x128xf32>
      %71 = arith.mulf %70, %69 : vector<2x128xf32>
      %72 = vector.broadcast %63 : f32 to vector<2x128xf32>
      %73 = arith.addf %71, %72 : vector<2x128xf32>
      %cst_26 = arith.constant 0.000000e+00 : f32
      %cst_27 = arith.constant 1.000000e+00 : f32
      %74 = vector.broadcast %cst_26 : f32 to vector<2x128xf32>
      %75 = arith.maximumf %74, %73 : vector<2x128xf32>
      %76 = vector.broadcast %cst_27 : f32 to vector<2x128xf32>
      %77 = arith.minimumf %76, %75 : vector<2x128xf32>
      %78 = vector.broadcast %3 : f32 to vector<2x128xf32>
      %79 = arith.mulf %22, %78 : vector<2x128xf32>
      %cst_28 = arith.constant 0.000000e+00 : f32
      %cst_29 = arith.constant 1.000000e+00 : f32
      %80 = vector.broadcast %cst_28 : f32 to vector<2x128xf32>
      %81 = arith.maximumf %80, %79 : vector<2x128xf32>
      %82 = vector.broadcast %cst_29 : f32 to vector<2x128xf32>
      %83 = arith.minimumf %82, %81 : vector<2x128xf32>
      %84 = vector.broadcast %6 : f32 to vector<2x128xf32>
      %85 = arith.mulf %84, %83 : vector<2x128xf32>
      %86 = vector.broadcast %63 : f32 to vector<2x128xf32>
      %87 = arith.addf %85, %86 : vector<2x128xf32>
      %cst_30 = arith.constant 0.000000e+00 : f32
      %cst_31 = arith.constant 1.000000e+00 : f32
      %88 = vector.broadcast %cst_30 : f32 to vector<2x128xf32>
      %89 = arith.maximumf %88, %87 : vector<2x128xf32>
      %90 = vector.broadcast %cst_31 : f32 to vector<2x128xf32>
      %91 = arith.minimumf %90, %89 : vector<2x128xf32>
      %92 = vector.broadcast %3 : f32 to vector<2x128xf32>
      %93 = arith.mulf %24, %92 : vector<2x128xf32>
      %cst_32 = arith.constant 0.000000e+00 : f32
      %cst_33 = arith.constant 1.000000e+00 : f32
      %94 = vector.broadcast %cst_32 : f32 to vector<2x128xf32>
      %95 = arith.maximumf %94, %93 : vector<2x128xf32>
      %96 = vector.broadcast %cst_33 : f32 to vector<2x128xf32>
      %97 = arith.minimumf %96, %95 : vector<2x128xf32>
      %98 = vector.broadcast %6 : f32 to vector<2x128xf32>
      %99 = arith.mulf %98, %97 : vector<2x128xf32>
      %100 = vector.broadcast %63 : f32 to vector<2x128xf32>
      %101 = arith.addf %99, %100 : vector<2x128xf32>
      %cst_34 = arith.constant 0.000000e+00 : f32
      %cst_35 = arith.constant 1.000000e+00 : f32
      %102 = vector.broadcast %cst_34 : f32 to vector<2x128xf32>
      %103 = arith.maximumf %102, %101 : vector<2x128xf32>
      %104 = vector.broadcast %cst_35 : f32 to vector<2x128xf32>
      %105 = arith.minimumf %104, %103 : vector<2x128xf32>
      %cst_36 = arith.constant 2.990000e-01 : f32
      %106 = vector.broadcast %cst_36 : f32 to vector<2x128xf32>
      %107 = arith.mulf %106, %77 : vector<2x128xf32>
      %cst_37 = arith.constant 5.870000e-01 : f32
      %108 = vector.broadcast %cst_37 : f32 to vector<2x128xf32>
      %109 = arith.mulf %108, %91 : vector<2x128xf32>
      %110 = arith.addf %107, %109 : vector<2x128xf32>
      %cst_38 = arith.constant 1.140000e-01 : f32
      %111 = vector.broadcast %cst_38 : f32 to vector<2x128xf32>
      %112 = arith.mulf %111, %105 : vector<2x128xf32>
      %113 = arith.addf %110, %112 : vector<2x128xf32>
      %cst_39 = arith.constant 1.000000e+00 : f32
      %114 = arith.subf %cst_39, %9 : f32
      %115 = vector.broadcast %9 : f32 to vector<2x128xf32>
      %116 = arith.mulf %115, %77 : vector<2x128xf32>
      %117 = vector.broadcast %114 : f32 to vector<2x128xf32>
      %118 = arith.mulf %117, %113 : vector<2x128xf32>
      %119 = arith.addf %116, %118 : vector<2x128xf32>
      %cst_40 = arith.constant 0.000000e+00 : f32
      %cst_41 = arith.constant 1.000000e+00 : f32
      %120 = vector.broadcast %cst_40 : f32 to vector<2x128xf32>
      %121 = arith.maximumf %120, %119 : vector<2x128xf32>
      %122 = vector.broadcast %cst_41 : f32 to vector<2x128xf32>
      %123 = arith.minimumf %122, %121 : vector<2x128xf32>
      %124 = vector.broadcast %9 : f32 to vector<2x128xf32>
      %125 = arith.mulf %124, %91 : vector<2x128xf32>
      %126 = vector.broadcast %114 : f32 to vector<2x128xf32>
      %127 = arith.mulf %126, %113 : vector<2x128xf32>
      %128 = arith.addf %125, %127 : vector<2x128xf32>
      %cst_42 = arith.constant 0.000000e+00 : f32
      %cst_43 = arith.constant 1.000000e+00 : f32
      %129 = vector.broadcast %cst_42 : f32 to vector<2x128xf32>
      %130 = arith.maximumf %129, %128 : vector<2x128xf32>
      %131 = vector.broadcast %cst_43 : f32 to vector<2x128xf32>
      %132 = arith.minimumf %131, %130 : vector<2x128xf32>
      %133 = vector.broadcast %9 : f32 to vector<2x128xf32>
      %134 = arith.mulf %133, %105 : vector<2x128xf32>
      %135 = vector.broadcast %114 : f32 to vector<2x128xf32>
      %136 = arith.mulf %135, %113 : vector<2x128xf32>
      %137 = arith.addf %134, %136 : vector<2x128xf32>
      %cst_44 = arith.constant 0.000000e+00 : f32
      %cst_45 = arith.constant 1.000000e+00 : f32
      %138 = vector.broadcast %cst_44 : f32 to vector<2x128xf32>
      %139 = arith.maximumf %138, %137 : vector<2x128xf32>
      %140 = vector.broadcast %cst_45 : f32 to vector<2x128xf32>
      %141 = arith.minimumf %140, %139 : vector<2x128xf32>
      %142 = arith.maximumf %123, %132 : vector<2x128xf32>
      %143 = arith.maximumf %142, %141 : vector<2x128xf32>
      %144 = arith.minimumf %123, %132 : vector<2x128xf32>
      %145 = arith.minimumf %144, %141 : vector<2x128xf32>
      %146 = arith.subf %143, %145 : vector<2x128xf32>
      %cst_46 = arith.constant 9.99999993E-9 : f32
      %147 = vector.broadcast %cst_46 : f32 to vector<2x128xf32>
      %148 = arith.addf %146, %147 : vector<2x128xf32>
      %149 = tpu.reciprocal %148 {approx = true} : vector<2x128xf32> -> vector<2x128xf32>
      %150 = arith.subf %143, %123 : vector<2x128xf32>
      %151 = arith.mulf %150, %149 : vector<2x128xf32>
      %152 = arith.subf %143, %132 : vector<2x128xf32>
      %153 = arith.mulf %152, %149 : vector<2x128xf32>
      %154 = arith.subf %143, %141 : vector<2x128xf32>
      %155 = arith.mulf %154, %149 : vector<2x128xf32>
      %156 = arith.cmpf oeq, %143, %123 : vector<2x128xf32>
      %157 = arith.subf %155, %153 : vector<2x128xf32>
      %158 = arith.cmpf oeq, %143, %132 : vector<2x128xf32>
      %cst_47 = arith.constant 2.000000e+00 : f32
      %159 = vector.broadcast %cst_47 : f32 to vector<2x128xf32>
      %160 = arith.addf %159, %151 : vector<2x128xf32>
      %161 = arith.subf %160, %155 : vector<2x128xf32>
      %cst_48 = arith.constant 4.000000e+00 : f32
      %162 = vector.broadcast %cst_48 : f32 to vector<2x128xf32>
      %163 = arith.addf %162, %153 : vector<2x128xf32>
      %164 = arith.subf %163, %151 : vector<2x128xf32>
      %165 = arith.select %158, %161, %164 : vector<2x128xi1>, vector<2x128xf32>
      %166 = arith.select %156, %157, %165 : vector<2x128xi1>, vector<2x128xf32>
      %cst_49 = arith.constant 0.000000e+00 : f32
      %167 = vector.broadcast %cst_49 : f32 to vector<2x128xf32>
      %168 = arith.cmpf olt, %166, %167 : vector<2x128xf32>
      %cst_50 = arith.constant 6.000000e+00 : f32
      %169 = vector.broadcast %cst_50 : f32 to vector<2x128xf32>
      %170 = arith.addf %166, %169 : vector<2x128xf32>
      %171 = arith.select %168, %170, %166 : vector<2x128xi1>, vector<2x128xf32>
      %cst_51 = arith.constant 9.99999993E-9 : f32
      %172 = vector.broadcast %cst_51 : f32 to vector<2x128xf32>
      %173 = arith.cmpf ole, %146, %172 : vector<2x128xf32>
      %cst_52 = arith.constant 0.000000e+00 : f32
      %174 = vector.broadcast %cst_52 : f32 to vector<2x128xf32>
      %175 = arith.select %173, %174, %171 : vector<2x128xi1>, vector<2x128xf32>
      %cst_53 = arith.constant 6.000000e+00 : f32
      %176 = arith.mulf %12, %cst_53 : f32
      %177 = vector.broadcast %176 : f32 to vector<2x128xf32>
      %178 = arith.addf %175, %177 : vector<2x128xf32>
      %cst_54 = arith.constant 0.000000e+00 : f32
      %179 = vector.broadcast %cst_54 : f32 to vector<2x128xf32>
      %180 = arith.cmpf olt, %178, %179 : vector<2x128xf32>
      %cst_55 = arith.constant 6.000000e+00 : f32
      %181 = vector.broadcast %cst_55 : f32 to vector<2x128xf32>
      %182 = arith.addf %178, %181 : vector<2x128xf32>
      %cst_56 = arith.constant 6.000000e+00 : f32
      %183 = vector.broadcast %cst_56 : f32 to vector<2x128xf32>
      %184 = arith.cmpf oge, %178, %183 : vector<2x128xf32>
      %cst_57 = arith.constant 6.000000e+00 : f32
      %185 = vector.broadcast %cst_57 : f32 to vector<2x128xf32>
      %186 = arith.subf %178, %185 : vector<2x128xf32>
      %187 = arith.select %184, %186, %178 : vector<2x128xi1>, vector<2x128xf32>
      %188 = arith.select %180, %182, %187 : vector<2x128xi1>, vector<2x128xf32>
      %cst_58 = arith.constant 5.000000e+00 : f32
      %189 = vector.broadcast %cst_58 : f32 to vector<2x128xf32>
      %190 = arith.addf %189, %188 : vector<2x128xf32>
      %cst_59 = arith.constant 6.000000e+00 : f32
      %191 = vector.broadcast %cst_59 : f32 to vector<2x128xf32>
      %192 = arith.cmpf oge, %190, %191 : vector<2x128xf32>
      %cst_60 = arith.constant 6.000000e+00 : f32
      %193 = vector.broadcast %cst_60 : f32 to vector<2x128xf32>
      %194 = arith.subf %190, %193 : vector<2x128xf32>
      %195 = arith.select %192, %194, %190 : vector<2x128xi1>, vector<2x128xf32>
      %cst_61 = arith.constant 4.000000e+00 : f32
      %196 = vector.broadcast %cst_61 : f32 to vector<2x128xf32>
      %197 = arith.subf %196, %195 : vector<2x128xf32>
      %198 = arith.minimumf %195, %197 : vector<2x128xf32>
      %cst_62 = arith.constant 0.000000e+00 : f32
      %cst_63 = arith.constant 1.000000e+00 : f32
      %199 = vector.broadcast %cst_62 : f32 to vector<2x128xf32>
      %200 = arith.maximumf %199, %198 : vector<2x128xf32>
      %201 = vector.broadcast %cst_63 : f32 to vector<2x128xf32>
      %202 = arith.minimumf %201, %200 : vector<2x128xf32>
      %203 = arith.mulf %146, %202 : vector<2x128xf32>
      %204 = arith.subf %143, %203 : vector<2x128xf32>
      %cst_64 = arith.constant 0.000000e+00 : f32
      %205 = vector.broadcast %cst_64 : f32 to vector<2x128xf32>
      %206 = arith.maximumf %204, %205 : vector<2x128xf32>
      %cst_65 = arith.constant 3.000000e+00 : f32
      %207 = vector.broadcast %cst_65 : f32 to vector<2x128xf32>
      %208 = arith.addf %207, %188 : vector<2x128xf32>
      %cst_66 = arith.constant 6.000000e+00 : f32
      %209 = vector.broadcast %cst_66 : f32 to vector<2x128xf32>
      %210 = arith.cmpf oge, %208, %209 : vector<2x128xf32>
      %cst_67 = arith.constant 6.000000e+00 : f32
      %211 = vector.broadcast %cst_67 : f32 to vector<2x128xf32>
      %212 = arith.subf %208, %211 : vector<2x128xf32>
      %213 = arith.select %210, %212, %208 : vector<2x128xi1>, vector<2x128xf32>
      %cst_68 = arith.constant 4.000000e+00 : f32
      %214 = vector.broadcast %cst_68 : f32 to vector<2x128xf32>
      %215 = arith.subf %214, %213 : vector<2x128xf32>
      %216 = arith.minimumf %213, %215 : vector<2x128xf32>
      %cst_69 = arith.constant 0.000000e+00 : f32
      %cst_70 = arith.constant 1.000000e+00 : f32
      %217 = vector.broadcast %cst_69 : f32 to vector<2x128xf32>
      %218 = arith.maximumf %217, %216 : vector<2x128xf32>
      %219 = vector.broadcast %cst_70 : f32 to vector<2x128xf32>
      %220 = arith.minimumf %219, %218 : vector<2x128xf32>
      %221 = arith.mulf %146, %220 : vector<2x128xf32>
      %222 = arith.subf %143, %221 : vector<2x128xf32>
      %cst_71 = arith.constant 0.000000e+00 : f32
      %223 = vector.broadcast %cst_71 : f32 to vector<2x128xf32>
      %224 = arith.maximumf %222, %223 : vector<2x128xf32>
      %cst_72 = arith.constant 1.000000e+00 : f32
      %225 = vector.broadcast %cst_72 : f32 to vector<2x128xf32>
      %226 = arith.addf %225, %188 : vector<2x128xf32>
      %cst_73 = arith.constant 6.000000e+00 : f32
      %227 = vector.broadcast %cst_73 : f32 to vector<2x128xf32>
      %228 = arith.cmpf oge, %226, %227 : vector<2x128xf32>
      %cst_74 = arith.constant 6.000000e+00 : f32
      %229 = vector.broadcast %cst_74 : f32 to vector<2x128xf32>
      %230 = arith.subf %226, %229 : vector<2x128xf32>
      %231 = arith.select %228, %230, %226 : vector<2x128xi1>, vector<2x128xf32>
      %cst_75 = arith.constant 4.000000e+00 : f32
      %232 = vector.broadcast %cst_75 : f32 to vector<2x128xf32>
      %233 = arith.subf %232, %231 : vector<2x128xf32>
      %234 = arith.minimumf %231, %233 : vector<2x128xf32>
      %cst_76 = arith.constant 0.000000e+00 : f32
      %cst_77 = arith.constant 1.000000e+00 : f32
      %235 = vector.broadcast %cst_76 : f32 to vector<2x128xf32>
      %236 = arith.maximumf %235, %234 : vector<2x128xf32>
      %237 = vector.broadcast %cst_77 : f32 to vector<2x128xf32>
      %238 = arith.minimumf %237, %236 : vector<2x128xf32>
      %239 = arith.mulf %146, %238 : vector<2x128xf32>
      %240 = arith.subf %143, %239 : vector<2x128xf32>
      %cst_78 = arith.constant 0.000000e+00 : f32
      %241 = vector.broadcast %cst_78 : f32 to vector<2x128xf32>
      %242 = arith.maximumf %240, %241 : vector<2x128xf32>
      %cst_79 = arith.constant 5.000000e-01 : f32
      %243 = arith.cmpf ogt, %18, %cst_79 : f32
      %244 = arith.extui %243 : i1 to i32
      %c0_i32_80 = arith.constant 0 : i32
      %245 = arith.cmpi ne, %244, %c0_i32_80 : i32
      scf.if %245 {
        %cst_83 = arith.constant 2.990000e-01 : f32
        %249 = vector.broadcast %cst_83 : f32 to vector<2x128xf32>
        %250 = arith.mulf %249, %206 : vector<2x128xf32>
        %cst_84 = arith.constant 5.870000e-01 : f32
        %251 = vector.broadcast %cst_84 : f32 to vector<2x128xf32>
        %252 = arith.mulf %251, %224 : vector<2x128xf32>
        %253 = arith.addf %250, %252 : vector<2x128xf32>
        %cst_85 = arith.constant 1.140000e-01 : f32
        %254 = vector.broadcast %cst_85 : f32 to vector<2x128xf32>
        %255 = arith.mulf %254, %242 : vector<2x128xf32>
        %256 = arith.addf %253, %255 : vector<2x128xf32>
        %cst_86 = arith.constant 4.850000e-01 : f32
        %257 = vector.broadcast %cst_86 : f32 to vector<2x128xf32>
        %258 = arith.subf %256, %257 : vector<2x128xf32>
        %cst_87 = arith.constant 4.36681223 : f32
        %259 = vector.broadcast %cst_87 : f32 to vector<2x128xf32>
        %260 = arith.mulf %258, %259 : vector<2x128xf32>
        %c0_88 = arith.constant 0 : index
        %c0_89 = arith.constant 0 : index
        %c0_90 = arith.constant 0 : index
        %c0_91 = arith.constant 0 : index
        %261 = vector.load %arg3[%c0_88, %c0_89, %c0_90, %c0_91] : memref<1x3x2x128xf32, #tpu.memory_space<vmem>>, vector<1x1x2x128xf32>
        %262 = vector.shape_cast %261 : vector<1x1x2x128xf32> to vector<2x128xf32>
        %263 = vector.shape_cast %260 : vector<2x128xf32> to vector<1x1x2x128xf32>
        tpu.vector_store %arg3[%c0_88, %c0_89, %c0_90, %c0_91], %263 {strides = array<i32>} : memref<1x3x2x128xf32, #tpu.memory_space<vmem>>, vector<1x1x2x128xf32>,
        %cst_92 = arith.constant 4.560000e-01 : f32
        %264 = vector.broadcast %cst_92 : f32 to vector<2x128xf32>
        %265 = arith.subf %256, %264 : vector<2x128xf32>
        %cst_93 = arith.constant 4.46428585 : f32
        %266 = vector.broadcast %cst_93 : f32 to vector<2x128xf32>
        %267 = arith.mulf %265, %266 : vector<2x128xf32>
        %c0_94 = arith.constant 0 : index
        %c1_95 = arith.constant 1 : index
        %c0_96 = arith.constant 0 : index
        %c0_97 = arith.constant 0 : index
        %268 = vector.load %arg3[%c0_94, %c1_95, %c0_96, %c0_97] : memref<1x3x2x128xf32, #tpu.memory_space<vmem>>, vector<1x1x2x128xf32>
        %269 = vector.shape_cast %268 : vector<1x1x2x128xf32> to vector<2x128xf32>
        %270 = vector.shape_cast %267 : vector<2x128xf32> to vector<1x1x2x128xf32>
        tpu.vector_store %arg3[%c0_94, %c1_95, %c0_96, %c0_97], %270 {strides = array<i32>} : memref<1x3x2x128xf32, #tpu.memory_space<vmem>>, vector<1x1x2x128xf32>,
        %cst_98 = arith.constant 4.060000e-01 : f32
        %271 = vector.broadcast %cst_98 : f32 to vector<2x128xf32>
        %272 = arith.subf %256, %271 : vector<2x128xf32>
        %cst_99 = arith.constant 4.44444466 : f32
        %273 = vector.broadcast %cst_99 : f32 to vector<2x128xf32>
        %274 = arith.mulf %272, %273 : vector<2x128xf32>
        %c0_100 = arith.constant 0 : index
        %c2_101 = arith.constant 2 : index
        %c0_102 = arith.constant 0 : index
        %c0_103 = arith.constant 0 : index
        %275 = vector.load %arg3[%c0_100, %c2_101, %c0_102, %c0_103] : memref<1x3x2x128xf32, #tpu.memory_space<vmem>>, vector<1x1x2x128xf32>
        %276 = vector.shape_cast %275 : vector<1x1x2x128xf32> to vector<2x128xf32>
        %277 = vector.shape_cast %274 : vector<2x128xf32> to vector<1x1x2x128xf32>
        tpu.vector_store %arg3[%c0_100, %c2_101, %c0_102, %c0_103], %277 {strides = array<i32>} : memref<1x3x2x128xf32, #tpu.memory_space<vmem>>, vector<1x1x2x128xf32>,
      } else {
      }
      %cst_81 = arith.constant 5.000000e-01 : f32
      %246 = arith.cmpf ole, %18, %cst_81 : f32
      %247 = arith.extui %246 : i1 to i32
      %c0_i32_82 = arith.constant 0 : i32
      %248 = arith.cmpi ne, %247, %c0_i32_82 : i32
      scf.if %248 {
        %cst_83 = arith.constant 4.850000e-01 : f32
        %249 = vector.broadcast %cst_83 : f32 to vector<2x128xf32>
        %250 = arith.subf %206, %249 : vector<2x128xf32>
        %cst_84 = arith.constant 4.36681223 : f32
        %251 = vector.broadcast %cst_84 : f32 to vector<2x128xf32>
        %252 = arith.mulf %250, %251 : vector<2x128xf32>
        %c0_85 = arith.constant 0 : index
        %c0_86 = arith.constant 0 : index
        %c0_87 = arith.constant 0 : index
        %c0_88 = arith.constant 0 : index
        %253 = vector.load %arg3[%c0_85, %c0_86, %c0_87, %c0_88] : memref<1x3x2x128xf32, #tpu.memory_space<vmem>>, vector<1x1x2x128xf32>
        %254 = vector.shape_cast %253 : vector<1x1x2x128xf32> to vector<2x128xf32>
        %255 = vector.shape_cast %252 : vector<2x128xf32> to vector<1x1x2x128xf32>
        tpu.vector_store %arg3[%c0_85, %c0_86, %c0_87, %c0_88], %255 {strides = array<i32>} : memref<1x3x2x128xf32, #tpu.memory_space<vmem>>, vector<1x1x2x128xf32>,
        %cst_89 = arith.constant 4.560000e-01 : f32
        %256 = vector.broadcast %cst_89 : f32 to vector<2x128xf32>
        %257 = arith.subf %224, %256 : vector<2x128xf32>
        %cst_90 = arith.constant 4.46428585 : f32
        %258 = vector.broadcast %cst_90 : f32 to vector<2x128xf32>
        %259 = arith.mulf %257, %258 : vector<2x128xf32>
        %c0_91 = arith.constant 0 : index
        %c1_92 = arith.constant 1 : index
        %c0_93 = arith.constant 0 : index
        %c0_94 = arith.constant 0 : index
        %260 = vector.load %arg3[%c0_91, %c1_92, %c0_93, %c0_94] : memref<1x3x2x128xf32, #tpu.memory_space<vmem>>, vector<1x1x2x128xf32>
        %261 = vector.shape_cast %260 : vector<1x1x2x128xf32> to vector<2x128xf32>
        %262 = vector.shape_cast %259 : vector<2x128xf32> to vector<1x1x2x128xf32>
        tpu.vector_store %arg3[%c0_91, %c1_92, %c0_93, %c0_94], %262 {strides = array<i32>} : memref<1x3x2x128xf32, #tpu.memory_space<vmem>>, vector<1x1x2x128xf32>,
        %cst_95 = arith.constant 4.060000e-01 : f32
        %263 = vector.broadcast %cst_95 : f32 to vector<2x128xf32>
        %264 = arith.subf %242, %263 : vector<2x128xf32>
        %cst_96 = arith.constant 4.44444466 : f32
        %265 = vector.broadcast %cst_96 : f32 to vector<2x128xf32>
        %266 = arith.mulf %264, %265 : vector<2x128xf32>
        %c0_97 = arith.constant 0 : index
        %c2_98 = arith.constant 2 : index
        %c0_99 = arith.constant 0 : index
        %c0_100 = arith.constant 0 : index
        %267 = vector.load %arg3[%c0_97, %c2_98, %c0_99, %c0_100] : memref<1x3x2x128xf32, #tpu.memory_space<vmem>>, vector<1x1x2x128xf32>
        %268 = vector.shape_cast %267 : vector<1x1x2x128xf32> to vector<2x128xf32>
        %269 = vector.shape_cast %266 : vector<2x128xf32> to vector<1x1x2x128xf32>
        tpu.vector_store %arg3[%c0_97, %c2_98, %c0_99, %c0_100], %269 {strides = array<i32>} : memref<1x3x2x128xf32, #tpu.memory_space<vmem>>, vector<1x1x2x128xf32>,
      } else {
      }
    } else {
    }
    %cst_10 = arith.constant 5.000000e-01 : f32
    %28 = arith.cmpf ole, %15, %cst_10 : f32
    %29 = arith.extui %28 : i1 to i32
    %c0_i32_11 = arith.constant 0 : i32
    %30 = arith.cmpi ne, %29, %c0_i32_11 : i32
    scf.if %30 {
      %cst_12 = arith.constant 5.000000e-01 : f32
      %31 = arith.cmpf ogt, %18, %cst_12 : f32
      %32 = arith.extui %31 : i1 to i32
      %c0_i32_13 = arith.constant 0 : i32
      %33 = arith.cmpi ne, %32, %c0_i32_13 : i32
      scf.if %33 {
        %cst_16 = arith.constant 2.990000e-01 : f32
        %37 = vector.broadcast %cst_16 : f32 to vector<2x128xf32>
        %38 = arith.mulf %37, %20 : vector<2x128xf32>
        %cst_17 = arith.constant 5.870000e-01 : f32
        %39 = vector.broadcast %cst_17 : f32 to vector<2x128xf32>
        %40 = arith.mulf %39, %22 : vector<2x128xf32>
        %41 = arith.addf %38, %40 : vector<2x128xf32>
        %cst_18 = arith.constant 1.140000e-01 : f32
        %42 = vector.broadcast %cst_18 : f32 to vector<2x128xf32>
        %43 = arith.mulf %42, %24 : vector<2x128xf32>
        %44 = arith.addf %41, %43 : vector<2x128xf32>
        %cst_19 = arith.constant 4.850000e-01 : f32
        %45 = vector.broadcast %cst_19 : f32 to vector<2x128xf32>
        %46 = arith.subf %44, %45 : vector<2x128xf32>
        %cst_20 = arith.constant 4.36681223 : f32
        %47 = vector.broadcast %cst_20 : f32 to vector<2x128xf32>
        %48 = arith.mulf %46, %47 : vector<2x128xf32>
        %c0_21 = arith.constant 0 : index
        %c0_22 = arith.constant 0 : index
        %c0_23 = arith.constant 0 : index
        %c0_24 = arith.constant 0 : index
        %49 = vector.load %arg3[%c0_21, %c0_22, %c0_23, %c0_24] : memref<1x3x2x128xf32, #tpu.memory_space<vmem>>, vector<1x1x2x128xf32>
        %50 = vector.shape_cast %49 : vector<1x1x2x128xf32> to vector<2x128xf32>
        %51 = vector.shape_cast %48 : vector<2x128xf32> to vector<1x1x2x128xf32>
        tpu.vector_store %arg3[%c0_21, %c0_22, %c0_23, %c0_24], %51 {strides = array<i32>} : memref<1x3x2x128xf32, #tpu.memory_space<vmem>>, vector<1x1x2x128xf32>,
        %cst_25 = arith.constant 4.560000e-01 : f32
        %52 = vector.broadcast %cst_25 : f32 to vector<2x128xf32>
        %53 = arith.subf %44, %52 : vector<2x128xf32>
        %cst_26 = arith.constant 4.46428585 : f32
        %54 = vector.broadcast %cst_26 : f32 to vector<2x128xf32>
        %55 = arith.mulf %53, %54 : vector<2x128xf32>
        %c0_27 = arith.constant 0 : index
        %c1_28 = arith.constant 1 : index
        %c0_29 = arith.constant 0 : index
        %c0_30 = arith.constant 0 : index
        %56 = vector.load %arg3[%c0_27, %c1_28, %c0_29, %c0_30] : memref<1x3x2x128xf32, #tpu.memory_space<vmem>>, vector<1x1x2x128xf32>
        %57 = vector.shape_cast %56 : vector<1x1x2x128xf32> to vector<2x128xf32>
        %58 = vector.shape_cast %55 : vector<2x128xf32> to vector<1x1x2x128xf32>
        tpu.vector_store %arg3[%c0_27, %c1_28, %c0_29, %c0_30], %58 {strides = array<i32>} : memref<1x3x2x128xf32, #tpu.memory_space<vmem>>, vector<1x1x2x128xf32>,
        %cst_31 = arith.constant 4.060000e-01 : f32
        %59 = vector.broadcast %cst_31 : f32 to vector<2x128xf32>
        %60 = arith.subf %44, %59 : vector<2x128xf32>
        %cst_32 = arith.constant 4.44444466 : f32
        %61 = vector.broadcast %cst_32 : f32 to vector<2x128xf32>
        %62 = arith.mulf %60, %61 : vector<2x128xf32>
        %c0_33 = arith.constant 0 : index
        %c2_34 = arith.constant 2 : index
        %c0_35 = arith.constant 0 : index
        %c0_36 = arith.constant 0 : index
        %63 = vector.load %arg3[%c0_33, %c2_34, %c0_35, %c0_36] : memref<1x3x2x128xf32, #tpu.memory_space<vmem>>, vector<1x1x2x128xf32>
        %64 = vector.shape_cast %63 : vector<1x1x2x128xf32> to vector<2x128xf32>
        %65 = vector.shape_cast %62 : vector<2x128xf32> to vector<1x1x2x128xf32>
        tpu.vector_store %arg3[%c0_33, %c2_34, %c0_35, %c0_36], %65 {strides = array<i32>} : memref<1x3x2x128xf32, #tpu.memory_space<vmem>>, vector<1x1x2x128xf32>,
      } else {
      }
      %cst_14 = arith.constant 5.000000e-01 : f32
      %34 = arith.cmpf ole, %18, %cst_14 : f32
      %35 = arith.extui %34 : i1 to i32
      %c0_i32_15 = arith.constant 0 : i32
      %36 = arith.cmpi ne, %35, %c0_i32_15 : i32
      scf.if %36 {
        %cst_16 = arith.constant 4.850000e-01 : f32
        %37 = vector.broadcast %cst_16 : f32 to vector<2x128xf32>
        %38 = arith.subf %20, %37 : vector<2x128xf32>
        %cst_17 = arith.constant 4.36681223 : f32
        %39 = vector.broadcast %cst_17 : f32 to vector<2x128xf32>
        %40 = arith.mulf %38, %39 : vector<2x128xf32>
        %c0_18 = arith.constant 0 : index
        %c0_19 = arith.constant 0 : index
        %c0_20 = arith.constant 0 : index
        %c0_21 = arith.constant 0 : index
        %41 = vector.load %arg3[%c0_18, %c0_19, %c0_20, %c0_21] : memref<1x3x2x128xf32, #tpu.memory_space<vmem>>, vector<1x1x2x128xf32>
        %42 = vector.shape_cast %41 : vector<1x1x2x128xf32> to vector<2x128xf32>
        %43 = vector.shape_cast %40 : vector<2x128xf32> to vector<1x1x2x128xf32>
        tpu.vector_store %arg3[%c0_18, %c0_19, %c0_20, %c0_21], %43 {strides = array<i32>} : memref<1x3x2x128xf32, #tpu.memory_space<vmem>>, vector<1x1x2x128xf32>,
        %cst_22 = arith.constant 4.560000e-01 : f32
        %44 = vector.broadcast %cst_22 : f32 to vector<2x128xf32>
        %45 = arith.subf %22, %44 : vector<2x128xf32>
        %cst_23 = arith.constant 4.46428585 : f32
        %46 = vector.broadcast %cst_23 : f32 to vector<2x128xf32>
        %47 = arith.mulf %45, %46 : vector<2x128xf32>
        %c0_24 = arith.constant 0 : index
        %c1_25 = arith.constant 1 : index
        %c0_26 = arith.constant 0 : index
        %c0_27 = arith.constant 0 : index
        %48 = vector.load %arg3[%c0_24, %c1_25, %c0_26, %c0_27] : memref<1x3x2x128xf32, #tpu.memory_space<vmem>>, vector<1x1x2x128xf32>
        %49 = vector.shape_cast %48 : vector<1x1x2x128xf32> to vector<2x128xf32>
        %50 = vector.shape_cast %47 : vector<2x128xf32> to vector<1x1x2x128xf32>
        tpu.vector_store %arg3[%c0_24, %c1_25, %c0_26, %c0_27], %50 {strides = array<i32>} : memref<1x3x2x128xf32, #tpu.memory_space<vmem>>, vector<1x1x2x128xf32>,
        %cst_28 = arith.constant 4.060000e-01 : f32
        %51 = vector.broadcast %cst_28 : f32 to vector<2x128xf32>
        %52 = arith.subf %24, %51 : vector<2x128xf32>
        %cst_29 = arith.constant 4.44444466 : f32
        %53 = vector.broadcast %cst_29 : f32 to vector<2x128xf32>
        %54 = arith.mulf %52, %53 : vector<2x128xf32>
        %c0_30 = arith.constant 0 : index
        %c2_31 = arith.constant 2 : index
        %c0_32 = arith.constant 0 : index
        %c0_33 = arith.constant 0 : index
        %55 = vector.load %arg3[%c0_30, %c2_31, %c0_32, %c0_33] : memref<1x3x2x128xf32, #tpu.memory_space<vmem>>, vector<1x1x2x128xf32>
        %56 = vector.shape_cast %55 : vector<1x1x2x128xf32> to vector<2x128xf32>
        %57 = vector.shape_cast %54 : vector<2x128xf32> to vector<1x1x2x128xf32>
        tpu.vector_store %arg3[%c0_30, %c2_31, %c0_32, %c0_33], %57 {strides = array<i32>} : memref<1x3x2x128xf32, #tpu.memory_space<vmem>>, vector<1x1x2x128xf32>,
      } else {
      }
    } else {
    }
    return
  }
  func.func @transform_0(%arg0: i32, %arg1: memref<16xf32, #tpu.memory_space<smem>>) -> (i32, i32, i32, i32) {
    %c0_i32 = arith.constant 0 : i32
    %c0_i32_0 = arith.constant 0 : i32
    %c0_i32_1 = arith.constant 0 : i32
    %c0_i32_2 = arith.constant 0 : i32
    return %arg0, %c0_i32, %c0_i32_0, %c0_i32_1 : i32, i32, i32, i32
  }
  func.func @transform_1(%arg0: i32, %arg1: memref<16xf32, #tpu.memory_space<smem>>) -> (i32, i32, i32, i32) {
    %c0_i32 = arith.constant 0 : i32
    %c0_i32_0 = arith.constant 0 : i32
    %c0_i32_1 = arith.constant 0 : i32
    %c0_i32_2 = arith.constant 0 : i32
    return %arg0, %c0_i32, %c0_i32_0, %c0_i32_1 : i32, i32, i32, i32
  }
}

</mosaic_0001>

<llo_original>
// kernel: tpu_custom_call.1
$region0: #{tpu_custom_call.1}
  #allocation0 [shape = 'u32[]', space=smem, size = 0x4, offset = 0x4, fixed_abs, tag = 'smem constant byte address 0x4 - core index']
  #allocation1 [shape = 'u32[144,128]{1,0:T(1,128)}', space=vmem, size = 0x12000, scoped, tag = 'internal scratch']
  #allocation2 [shape = 's32[1]{0}', space=sflag, size = 0x4, scoped, tag = 'scoped memory for tpu_custom_call.1']
  #allocation3 [shape = 'u8[512]{0}', space=smem, size = 0x200, scoped, tag = 'prefetched SMEM operand 0']
  %s0 = inlined_call_operand.hbm [shape: f32[16], index: 0, kind: input, shape index: {}]
  %s1 = inlined_call_operand.hbm [shape: f32[2,3,2,128], index: 1, kind: input, shape index: {}]
  %s2 = inlined_call_operand.hbm [shape: f32[2,3,2,128], index: 2, kind: output, shape index: {}]
  %s3 = sld [smem:[#allocation0]]
  $region65: #{tpu_custom_call.1} parent=0
    _
  %s5 = ssub.s32 1, %s3
  %s6 = scalar_select 0, %s5, %s3
  %8 = dma.hbm_to_smem %s0, 16, [#allocation3], [#allocation2]
  %9 = dma.done [#allocation2], 16
  %10 = sfence
  $region1: #{tpu_custom_call.1} parent=0
    #allocation4 [shape = 'u8[6144]{0}', space=vmem, size = 0x1800, scoped, tag = 'input window, operand 1']
    #allocation5 [shape = 's32[2]{0}', space=sflag, size = 0x8, scoped, tag = 'scoped memory for tpu_custom_call.1']
    #allocation6 [shape = 's32[2]{0}', space=sflag, size = 0x8, scoped, tag = 'scoped memory for tpu_custom_call.1']
    #allocation7 [shape = 'u8[6144]{0}', space=vmem, size = 0x1800, scoped, tag = 'output window, operand 0']
    %11 = vsyncpa [#allocation5], 0
    %s12 = scalar_lea.sflag [#allocation5], 1
    %13 = vsyncpa %s12, 0
    %14 = vsyncpa [#allocation6], 0
    %s15 = scalar_lea.sflag [#allocation6], 1
    %16 = vsyncpa %s15, 0
    loop: start=0, step=1, limit=4
    $region2: #{tpu_custom_call.1} parent=1 // loop_pre_header
      _
    $region3: #{tpu_custom_call.1} parent=1 // loop_header
      %s18 = sphi 0, %s22
      %p19 = scmp.ge.s32.totalorder %s18, 4
      %s28 = sphi 0, %s30
      %s31 = sphi 0, %s28
      %s32 = sphi 0, %s31
      %s48 = sphi 0, %s32
      %s54 = sphi 0, %s56
      %s57 = sphi 0, %s54
      %s58 = sphi 0, %s57
      %s74 = sphi 0, %s58
    $region4: #{tpu_custom_call.1} parent=1 // loop_header_branch
      %21 = sbr.rel (%p19) target = $region8
    $region5: #{tpu_custom_call.1} parent=1 // loop_body
      %s23 = ssub.s32 %s18, 1
      %s24 = ssub.s32 %s18, 2
      %s25 = sadd.s32 %s18, 1
      %s26 = ssub.s32 %s18, %s25
      %p27 = scmp.eq.s32.totalorder %s26, 0
      %s29 = sadd.s32 %s28, 1
      %s30 = scalar_select %p27, %s28, %s29
      %p33 = pneg %p27
      %p34 = scmp.eq.s32.totalorder %s18, 1
      %p35 = por %p33, %p34
      %p36 = scmp.ne.s32.totalorder %s28, %s31
      %p37 = scmp.eq.s32.totalorder %s18, 0
      %p38 = por %p36, %p37
      %p39 = scmp.ne.s32.totalorder %s28, %s31
      %p40 = scmp.eq.s32.totalorder %s23, 1
      %p41 = por %p39, %p40
      %p42 = scmp.ne.s32.totalorder %s31, %s32
      %p43 = scmp.eq.s32.totalorder %s23, 0
      %p44 = por %p42, %p43
      %p45 = scmp.ne.s32.totalorder %s31, %s32
      %p46 = scmp.eq.s32.totalorder %s24, 1
      %p47 = por %p45, %p46
      %p49 = scmp.ne.s32.totalorder %s32, %s48
      %p50 = scmp.eq.s32.totalorder %s24, 0
      %p51 = por %p49, %p50
      %s52 = ssub.s32 %s18, %s25
      %p53 = scmp.eq.s32.totalorder %s52, 0
      %s55 = sadd.s32 %s54, 1
      %s56 = scalar_select %p53, %s54, %s55
      %p59 = pneg %p53
      %p60 = scmp.eq.s32.totalorder %s18, 1
      %p61 = por %p59, %p60
      %p62 = scmp.ne.s32.totalorder %s54, %s57
      %p63 = scmp.eq.s32.totalorder %s18, 0
      %p64 = por %p62, %p63
      %p65 = scmp.ne.s32.totalorder %s54, %s57
      %p66 = scmp.eq.s32.totalorder %s23, 1
      %p67 = por %p65, %p66
      %p68 = scmp.ne.s32.totalorder %s57, %s58
      %p69 = scmp.eq.s32.totalorder %s23, 0
      %p70 = por %p68, %p69
      %p71 = scmp.ne.s32.totalorder %s57, %s58
      %p72 = scmp.eq.s32.totalorder %s24, 1
      %p73 = por %p71, %p72
      %p75 = scmp.ne.s32.totalorder %s58, %s74
      %p76 = scmp.eq.s32.totalorder %s24, 0
      %p77 = por %p75, %p76
      %p78 = scmp.le.s32.totalorder 1, %s18
      %p79 = scmp.lt.s32.totalorder %s18, 3
      %p80 = pnand %p78, %p79
      %p81 = pneg %p80
      // Predicated region
      $region9: #{tpu_custom_call.1} parent=5 // pred_check
        _
      $region10: #{tpu_custom_call.1} parent=5 // pred_check_branch
        %83 = sbr.rel (%p80) target = $region12
      $region11: #{tpu_custom_call.1} parent=5 // pred_region
        %s84 = ssub.s32 %s18, 1
      $region12: #{tpu_custom_call.1} parent=5 // pred_fallthru
        _
      %p85 = scmp.lt.s32.totalorder %s18, 2
      // Predicated region
      $region13: #{tpu_custom_call.1} parent=5 // pred_check
        %p86 = pneg %p85
      $region14: #{tpu_custom_call.1} parent=5 // pred_check_branch
        %88 = sbr.rel (%p86) target = $region16
      $region15: #{tpu_custom_call.1} parent=5 // pred_region
        // Predicated region
        $region17: #{tpu_custom_call.1} parent=15 // pred_check
          %p89 = pneg %p38
        $region18: #{tpu_custom_call.1} parent=15 // pred_check_branch
          %91 = sbr.rel (%p89) target = $region20
        $region19: #{tpu_custom_call.1} parent=15 // pred_region
          %s92 = sand.u32 %s28, 1
          %s93 = scalar_lea.sflag [#allocation5], %s92
          %s94 = sand.u32 %s28, 1
          %s95 = smul.addr %s94, 6
          %s96 = scalar_lea.vmem [#allocation4], %s95
          %s98 = ssub.s32 96, 96
          %99 = vsyncadd %s93, %s98
          %s100 = smul.addr %s18, 3
          %s101 = smul.addr %s100, 32
          %s102 = scalar_lea.hbm %s1, %s101
          %s103 = sshll.u32 %s96, 4
          %s104 = int_to_ptr.vmem [resolvable:$true] %s103
          %109 = dma.hbm_to_vmem [thread:$0]  %s102, 96, %s104, %s93, 32, 32, 2
        $region20: #{tpu_custom_call.1} parent=15 // pred_fallthru
          _
      $region16: #{tpu_custom_call.1} parent=5 // pred_fallthru
        _
      %p110 = scmp.le.s32.totalorder 1, %s18
      %p111 = scmp.lt.s32.totalorder %s18, 3
      %p112 = pnand %p110, %p111
      %p113 = pneg %p112
      // Predicated region
      $region21: #{tpu_custom_call.1} parent=5 // pred_check
        _
      $region22: #{tpu_custom_call.1} parent=5 // pred_check_branch
        %115 = sbr.rel (%p112) target = $region24
      $region23: #{tpu_custom_call.1} parent=5 // pred_region
        %s116 = ssub.s32 %s18, 1
        %s117 = sand.u32 %s31, 1
        %s118 = scalar_lea.sflag [#allocation5], %s117
        %s119 = sand.u32 %s31, 1
        %s120 = smul.addr %s119, 6
        %s121 = scalar_lea.vmem [#allocation4], %s120
        // Predicated region
        $region25: #{tpu_custom_call.1} parent=23 // pred_check
          %p122 = pneg %p44
        $region26: #{tpu_custom_call.1} parent=23 // pred_check_branch
          %124 = sbr.rel (%p122) target = $region28
        $region27: #{tpu_custom_call.1} parent=23 // pred_region
          %125 = dma.done %s118, 96
        $region28: #{tpu_custom_call.1} parent=23 // pred_fallthru
          _
        %s126 = sand.u32 %s31, 1
        %s127 = scalar_lea.sflag [#allocation5], %s126
        %s128 = sand.u32 %s31, 1
        %s129 = smul.addr %s128, 6
        %s130 = scalar_lea.vmem [#allocation4], %s129
        %p131 = pneg %p44
        %p132 = pneg %p41
        %p133 = pneg %p70
        %p134 = pneg %p67
        %s135 = sand.u32 %s57, 1
        %s136 = scalar_lea.sflag [#allocation6], %s135
        %s137 = sand.u32 %s57, 1
        %s138 = smul.addr %s137, 6
        %s139 = scalar_lea.vmem [#allocation7], %s138
        %s140 = smul.u32 %s23, 8
        %s141 = sld [smem:[#allocation3 + %s140]]
        %s142 = sadd.s32 %s140, 1
        %s143 = sld [smem:[#allocation3 + %s142]]
        %s144 = sadd.s32 %s140, 2
        %s145 = sld [smem:[#allocation3 + %s144]]
        %s146 = sadd.s32 %s140, 3
        %s147 = sld [smem:[#allocation3 + %s146]]
        %s148 = sadd.s32 %s140, 4
        %s149 = sld [smem:[#allocation3 + %s148]]
        %s150 = sadd.s32 %s140, 5
        %s151 = sld [smem:[#allocation3 + %s150]]
        %v152 = vld [vmem:[%s121] sm:$0x3]
        %s153 = scalar_lea.vmem %s121, 2 [#allocation4]
        %v154 = vld [vmem:[%s153] sm:$0x3]
        %s155 = scalar_lea.vmem %s121, 4 [#allocation4]
        %v156 = vld [vmem:[%s155] sm:$0x3]
        %p157 = scmp.gt.f32.partialorder %s149, 0.5
        // Predicated region
        $region29: #{tpu_custom_call.1} parent=23 // pred_check
          %p158 = pneg %p157
        $region30: #{tpu_custom_call.1} parent=23 // pred_check_branch
          %160 = sbr.rel (%p158) target = $region32
        $region31: #{tpu_custom_call.1} parent=23 // pred_region
          %v161 = vstv %s141
          %v162 = vmul.f32 %v152, %v161
          %v163 = vmax.f32 %v162, 0.0
          %v164 = vmin.f32 %v163, 1.0
          %v165 = vmul.f32 %v154, %v161
          %v166 = vmax.f32 %v165, 0.0
          %v167 = vmin.f32 %v166, 1.0
          %v168 = vmul.f32 %v156, %v161
          %v169 = vmax.f32 %v168, 0.0
          %v170 = vmin.f32 %v169, 1.0
          %v171 = vmul.f32 %v164, 0.299
          %v172 = vmul.f32 %v167, 0.587
          %v173 = vadd.f32 %v171, %v172
          %v174 = vmul.f32 %v170, 0.114
          %v175 = vadd.f32 %v173, %v174
          %vm176 = vcmask 1041408
          %v177 = vsel %vm176, %v175, 0.0
          %178 = vadd.xlane.f32.xlu0 %v177
          %v179 = vpop.xlane.xlu0 %178
          %v180 = vrot.slane %v179, 4
          %v181 = vadd.f32 %v179, %v180
          %v182 = vrot.slane %v181, 2
          %v183 = vadd.f32 %v181, %v182
          %v184 = vrot.slane %v183, 1
          %v185 = vadd.f32 %v183, %v184
          %s186 = vtos %v185
          %s187 = smul.f32 %s186, 0.00390625
          %s188 = ssub.f32 1.0, %s143
          %s189 = smul.f32 %s188, %s187
          %v190 = vstv %s143
          %v191 = vmul.f32 %v190, %v164
          %v192 = vstv %s189
          %v193 = vadd.f32 %v191, %v192
          %v194 = vmax.f32 %v193, 0.0
          %v195 = vmin.f32 %v194, 1.0
          %v196 = vmul.f32 %v190, %v167
          %v197 = vadd.f32 %v196, %v192
          %v198 = vmax.f32 %v197, 0.0
          %v199 = vmin.f32 %v198, 1.0
          %v200 = vmul.f32 %v190, %v170
          %v201 = vadd.f32 %v200, %v192
          %v202 = vmax.f32 %v201, 0.0
          %v203 = vmin.f32 %v202, 1.0
          %v204 = vmul.f32 %v195, 0.299
          %v205 = vmul.f32 %v199, 0.587
          %v206 = vadd.f32 %v204, %v205
          %v207 = vmul.f32 %v203, 0.114
          %v208 = vadd.f32 %v206, %v207
          %s209 = ssub.f32 1.0, %s145
          %v210 = vstv %s145
          %v211 = vmul.f32 %v210, %v195
          %v212 = vstv %s209
          %v213 = vmul.f32 %v212, %v208
          %v214 = vadd.f32 %v211, %v213
          %v215 = vmax.f32 %v214, 0.0
          %v216 = vmin.f32 %v215, 1.0
          %v217 = vmul.f32 %v210, %v199
          %v218 = vadd.f32 %v217, %v213
          %v219 = vmax.f32 %v218, 0.0
          %v220 = vmin.f32 %v219, 1.0
          %v221 = vmul.f32 %v210, %v203
          %v222 = vadd.f32 %v221, %v213
          %v223 = vmax.f32 %v222, 0.0
          %v224 = vmin.f32 %v223, 1.0
          %v225 = vmax.f32 %v216, %v220
          %v226 = vmax.f32 %v225, %v224
          %v227 = vmin.f32 %v216, %v220
          %v228 = vmin.f32 %v227, %v224
          %v229 = vsub.f32 %v226, %v228
          %v230 = vadd.f32 %v229, 1e-08
          %v231 = vrcp.pop %v230
          %v232 = vsub.f32 %v226, %v216
          %v233 = vmul.f32 %v232, %v231
          %v234 = vsub.f32 %v226, %v220
          %v235 = vmul.f32 %v234, %v231
          %v236 = vsub.f32 %v226, %v224
          %v237 = vmul.f32 %v236, %v231
          %vm238 = vcmp.eq.f32.partialorder %v226, %v216
          %v239 = vsub.f32 %v237, %v235
          %vm240 = vcmp.eq.f32.partialorder %v226, %v220
          %v241 = vadd.f32 %v233, 2.0
          %v242 = vsub.f32 %v241, %v237
          %v243 = vadd.f32 %v235, 4.0
          %v244 = vsub.f32 %v243, %v233
          %v245 = vsel %vm240, %v242, %v244
          %v246 = vsel %vm238, %v239, %v245
          %vm247 = vcmp.lt.f32.partialorder %v246, 0.0
          %v248 = vadd.f32 %v246, 6.0
          %v249 = vsel %vm247, %v248, %v246
          %vm250 = vcmp.le.f32.partialorder %v229, 1e-08
          %v251 = vsel %vm250, 0.0, %v249
          %s252 = smul.f32 %s147, 6.0
          %v253 = vstv %s252
          %v254 = vadd.f32 %v251, %v253
          %vm255 = vcmp.lt.f32.partialorder %v254, 0.0
          %v256 = vadd.f32 %v254, 6.0
          %vm257 = vcmp.ge.f32.partialorder %v254, 6.0
          %v258 = vsub.f32 %v254, 6.0
          %v259 = vsel %vm257, %v258, %v254
          %v260 = vsel %vm255, %v256, %v259
          %v261 = vadd.f32 %v260, 5.0
          %vm262 = vcmp.ge.f32.partialorder %v261, 6.0
          %v263 = vsub.f32 %v261, 6.0
          %v264 = vsel %vm262, %v263, %v261
          %v265 = vsub.f32 4.0, %v264
          %v266 = vmin.f32 %v264, %v265
          %v267 = vmax.f32 %v266, 0.0
          %v268 = vmin.f32 %v267, 1.0
          %v269 = vmul.f32 %v229, %v268
          %v270 = vsub.f32 %v226, %v269
          %v271 = vmax.f32 %v270, 0.0
          %v272 = vadd.f32 %v260, 3.0
          %vm273 = vcmp.ge.f32.partialorder %v272, 6.0
          %v274 = vsub.f32 %v272, 6.0
          %v275 = vsel %vm273, %v274, %v272
          %v276 = vsub.f32 4.0, %v275
          %v277 = vmin.f32 %v275, %v276
          %v278 = vmax.f32 %v277, 0.0
          %v279 = vmin.f32 %v278, 1.0
          %v280 = vmul.f32 %v229, %v279
          %v281 = vsub.f32 %v226, %v280
          %v282 = vmax.f32 %v281, 0.0
          %v283 = vadd.f32 %v260, 1.0
          %vm284 = vcmp.ge.f32.partialorder %v283, 6.0
          %v285 = vsub.f32 %v283, 6.0
          %v286 = vsel %vm284, %v285, %v283
          %v287 = vsub.f32 4.0, %v286
          %v288 = vmin.f32 %v286, %v287
          %v289 = vmax.f32 %v288, 0.0
          %v290 = vmin.f32 %v289, 1.0
          %v291 = vmul.f32 %v229, %v290
          %v292 = vsub.f32 %v226, %v291
          %v293 = vmax.f32 %v292, 0.0
          %p294 = scmp.gt.f32.partialorder %s151, 0.5
          // Predicated region
          $region33: #{tpu_custom_call.1} parent=31 // pred_check
            %p295 = pneg %p294
          $region34: #{tpu_custom_call.1} parent=31 // pred_check_branch
            %297 = sbr.rel (%p295) target = $region36
          $region35: #{tpu_custom_call.1} parent=31 // pred_region
            %v298 = vmul.f32 %v271, 0.299
            %v299 = vmul.f32 %v282, 0.587
            %v300 = vadd.f32 %v298, %v299
            %v301 = vmul.f32 %v293, 0.114
            %v302 = vadd.f32 %v300, %v301
            %v303 = vsub.f32 %v302, 0.485
            %v304 = vmul.f32 %v303, 4.366812
            %305 = vst [vmem:[%s139] sm:$0x3] %v304
            %v306 = vsub.f32 %v302, 0.456
            %v307 = vmul.f32 %v306, 4.464286
            %s308 = scalar_lea.vmem %s139, 2 [#allocation7]
            %309 = vst [vmem:[%s308] sm:$0x3] %v307
            %v310 = vsub.f32 %v302, 0.406
            %v311 = vmul.f32 %v310, 4.4444447
            %s312 = scalar_lea.vmem %s139, 4 [#allocation7]
            %313 = vst [vmem:[%s312] sm:$0x3] %v311
          $region36: #{tpu_custom_call.1} parent=31 // pred_fallthru
            _
          %p314 = scmp.le.f32.partialorder %s151, 0.5
          // Predicated region
          $region37: #{tpu_custom_call.1} parent=31 // pred_check
            %p315 = pneg %p314
          $region38: #{tpu_custom_call.1} parent=31 // pred_check_branch
            %317 = sbr.rel (%p315) target = $region40
          $region39: #{tpu_custom_call.1} parent=31 // pred_region
            %v318 = vsub.f32 %v271, 0.485
            %v319 = vmul.f32 %v318, 4.366812
            %320 = vst [vmem:[%s139] sm:$0x3] %v319
            %v321 = vsub.f32 %v282, 0.456
            %v322 = vmul.f32 %v321, 4.464286
            %s323 = scalar_lea.vmem %s139, 2 [#allocation7]
            %324 = vst [vmem:[%s323] sm:$0x3] %v322
            %v325 = vsub.f32 %v293, 0.406
            %v326 = vmul.f32 %v325, 4.4444447
            %s327 = scalar_lea.vmem %s139, 4 [#allocation7]
            %328 = vst [vmem:[%s327] sm:$0x3] %v326
          $region40: #{tpu_custom_call.1} parent=31 // pred_fallthru
            _
        $region32: #{tpu_custom_call.1} parent=23 // pred_fallthru
          _
        %p329 = scmp.le.f32.partialorder %s149, 0.5
        // Predicated region
        $region41: #{tpu_custom_call.1} parent=23 // pred_check
          %p330 = pneg %p329
        $region42: #{tpu_custom_call.1} parent=23 // pred_check_branch
          %332 = sbr.rel (%p330) target = $region44
        $region43: #{tpu_custom_call.1} parent=23 // pred_region
          %p333 = scmp.gt.f32.partialorder %s151, 0.5
          // Predicated region
          $region45: #{tpu_custom_call.1} parent=43 // pred_check
            %p334 = pneg %p333
          $region46: #{tpu_custom_call.1} parent=43 // pred_check_branch
            %336 = sbr.rel (%p334) target = $region48
          $region47: #{tpu_custom_call.1} parent=43 // pred_region
            %v337 = vmul.f32 %v152, 0.299
            %v338 = vmul.f32 %v154, 0.587
            %v339 = vadd.f32 %v337, %v338
            %v340 = vmul.f32 %v156, 0.114
            %v341 = vadd.f32 %v339, %v340
            %v342 = vsub.f32 %v341, 0.485
            %v343 = vmul.f32 %v342, 4.366812
            %344 = vst [vmem:[%s139] sm:$0x3] %v343
            %v345 = vsub.f32 %v341, 0.456
            %v346 = vmul.f32 %v345, 4.464286
            %s347 = scalar_lea.vmem %s139, 2 [#allocation7]
            %348 = vst [vmem:[%s347] sm:$0x3] %v346
            %v349 = vsub.f32 %v341, 0.406
            %v350 = vmul.f32 %v349, 4.4444447
            %s351 = scalar_lea.vmem %s139, 4 [#allocation7]
            %352 = vst [vmem:[%s351] sm:$0x3] %v350
          $region48: #{tpu_custom_call.1} parent=43 // pred_fallthru
            _
          %p353 = scmp.le.f32.partialorder %s151, 0.5
          // Predicated region
          $region49: #{tpu_custom_call.1} parent=43 // pred_check
            %p354 = pneg %p353
          $region50: #{tpu_custom_call.1} parent=43 // pred_check_branch
            %356 = sbr.rel (%p354) target = $region52
          $region51: #{tpu_custom_call.1} parent=43 // pred_region
            %v357 = vsub.f32 %v152, 0.485
            %v358 = vmul.f32 %v357, 4.366812
            %359 = vst [vmem:[%s139] sm:$0x3] %v358
            %v360 = vsub.f32 %v154, 0.456
            %v361 = vmul.f32 %v360, 4.464286
            %s362 = scalar_lea.vmem %s139, 2 [#allocation7]
            %363 = vst [vmem:[%s362] sm:$0x3] %v361
            %v364 = vsub.f32 %v156, 0.406
            %v365 = vmul.f32 %v364, 4.4444447
            %s366 = scalar_lea.vmem %s139, 4 [#allocation7]
            %367 = vst [vmem:[%s366] sm:$0x3] %v365
          $region52: #{tpu_custom_call.1} parent=43 // pred_fallthru
            _
        $region44: #{tpu_custom_call.1} parent=23 // pred_fallthru
          _
        %s368 = sand.u32 %s57, 1
        %s369 = scalar_lea.sflag [#allocation6], %s368
        %s370 = sand.u32 %s57, 1
        %s371 = smul.addr %s370, 6
        %s372 = scalar_lea.vmem [#allocation7], %s371
        // Predicated region
        $region53: #{tpu_custom_call.1} parent=23 // pred_check
          %p373 = pneg %p67
        $region54: #{tpu_custom_call.1} parent=23 // pred_check_branch
          %375 = sbr.rel (%p373) target = $region56
        $region55: #{tpu_custom_call.1} parent=23 // pred_region
          %s377 = ssub.s32 96, 96
          %378 = vsyncadd %s369, %s377
          %s379 = smul.addr %s23, 3
          %s380 = smul.addr %s379, 32
          %s381 = scalar_lea.hbm %s2, %s380
          %s382 = sshll.u32 %s372, 4
          %s383 = int_to_ptr.vmem [resolvable:$true] %s382
          %388 = dma.vmem_to_hbm [thread:$0]  %s383, 96, %s381, %s369, 32, 32, 2
        $region56: #{tpu_custom_call.1} parent=23 // pred_fallthru
          _
      $region24: #{tpu_custom_call.1} parent=5 // pred_fallthru
        _
      %p389 = scmp.le.s32.totalorder 2, %s18
      // Predicated region
      $region57: #{tpu_custom_call.1} parent=5 // pred_check
        %p390 = pneg %p389
      $region58: #{tpu_custom_call.1} parent=5 // pred_check_branch
        %392 = sbr.rel (%p390) target = $region60
      $region59: #{tpu_custom_call.1} parent=5 // pred_region
        %s393 = ssub.s32 %s18, 2
        // Predicated region
        $region61: #{tpu_custom_call.1} parent=59 // pred_check
          %p394 = pneg %p73
        $region62: #{tpu_custom_call.1} parent=59 // pred_check_branch
          %396 = sbr.rel (%p394) target = $region64
        $region63: #{tpu_custom_call.1} parent=59 // pred_region
          %s397 = sand.u32 %s58, 1
          %s398 = scalar_lea.sflag [#allocation6], %s397
          %s399 = sand.u32 %s58, 1
          %s400 = smul.addr %s399, 6
          %s401 = scalar_lea.vmem [#allocation7], %s400
          %402 = dma.done %s398, 96
        $region64: #{tpu_custom_call.1} parent=59 // pred_fallthru
          _
      $region60: #{tpu_custom_call.1} parent=5 // pred_fallthru
        _
    $region6: #{tpu_custom_call.1} parent=1 // loop_footer
      %s22 = sadd.s32 1, %s18
    $region7: #{tpu_custom_call.1} parent=1 // loop_footer_branch
      %17 = sbr.rel target = $region3
    $region8: #{tpu_custom_call.1} parent=1 // loop_exit
      _
    %403 = vsyncpa [#allocation5], 1
    %s404 = scalar_lea.sflag [#allocation5], 1
    %405 = vsyncpa %s404, 1
    %406 = vsyncpa [#allocation6], 1
    %s407 = scalar_lea.sflag [#allocation6], 1
    %408 = vsyncpa %s407, 1

</llo_original>
